<compile_context>
chip_gen: v7x
topology: tpu7x:2x2x1
jax: 0.10.0
libtpu: 0.0.40
codegen_flags: <defaults>
</compile_context>

<pallas_src>
import functools

import jax
import jax.numpy as jnp
import numpy as np
from jax import lax
from jax.experimental import pallas as pl
from jax.experimental import pallas as pl  # noqa: F811 (kept single import path clear)
from jax.experimental.pallas import tpu as pltpu  # noqa: F401  (no TPU-specific params needed for this grid-less call)


def _round_up(n, m):
    return ((n + m - 1) // m) * m


# ----------------------- parameter prep (done ONCE) -------------------------

def prepare_decoder_params(p, compute_dtype=jnp.bfloat16):
    """Pack PyTorch-layout weights into the fused-kernel layout (one-time)."""
    H = p["w_hh_f"].shape[1]
    V = p["w_out"].shape[0]
    H2, H4, H8 = 2 * H, 4 * H, 8 * H
    Vp = max(_round_up(V, 128), 128)      # lane-dense padded vocab for output head
    R = max(V, H2)                        # weight-slab row count

    def interleave(mf, mr):
        # (rows, 4H) fwd / rev gate-major [i|f|g|o] -> (rows, 8H) with column
        # blocks [i_f, i_r, f_f, f_r, g_f, g_r, o_f, o_r].
        rows = mf.shape[0]
        return jnp.stack([mf.reshape(rows, 4, H), mr.reshape(rows, 4, H)],
                         axis=2).reshape(rows, H8)

    emb = p["embedding"]
    bias = interleave((p["b_ih_f"] + p["b_hh_f"])[None, :],
                      (p["b_ih_r"] + p["b_hh_r"])[None, :])            # (1, 8H)
    zv = jnp.zeros((V, H4), jnp.float32)
    # Embedding table folded with the per-direction input projection; the full
    # LSTM bias is folded onto the fwd table (one-hot rows select it exactly once).
    exf = interleave(emb @ p["w_ih_f"].T, zv) + bias                   # (V, 8H)
    exr = interleave(zv, emb @ p["w_ih_r"].T)                          # (V, 8H)

    zh = jnp.zeros((H, H4), jnp.float32)
    whh = jnp.concatenate([interleave(p["w_hh_f"].T, zh),
                           interleave(zh, p["w_hh_r"].T)], axis=0)     # (2H, 8H) block-diag

    # PyTorch's hid is hidden-major / direction-interleaved; the kernel state is
    # direction-major -> bake the permutation into the attention-side weights.
    j = np.arange(H2)
    perm = 2 * (j % H) + (j // H)
    wiq = p["w_inter"][perm, :]                                        # (2H, 2H)
    wct = p["w_ctx"].T                                                 # (4H, H)
    wcc = wct[:H2, :]                                                  # applied to ctx
    wch = wct[H2:, :][perm, :]                                         # applied to dir-major hid

    wo = jnp.zeros((H, Vp), jnp.float32).at[:, :V].set(p["w_out"].T)   # zero-pad cols
    bo = jnp.full((Vp,), -1e30, jnp.float32).at[:V].set(p["b_out"])    # padded logits -> -inf-ish

    # Pack every matmul weight into ONE bf16 slab (single DMA); every block starts
    # at a 128-lane-aligned column offset so kernel slices are clean loads.
    layout, cols, off = {}, [], 0
    for name, mat in (("EXF", exf), ("EXR", exr), ("WHH", whh), ("WIQ", wiq),
                      ("WCC", wcc), ("WCH", wch), ("WO", wo)):
        r, c = mat.shape
        cp = _round_up(c, 128)
        cols.append(jnp.zeros((R, cp), jnp.float32).at[:r, :c].set(mat))
        layout[name] = off
        off += cp
    wslab = jnp.concatenate(cols, axis=1).astype(compute_dtype)        # (R, sum)

    layout["BC"] = 0
    layout["BO"] = _round_up(H, 128)
    bslab = jnp.zeros((1, layout["BO"] + Vp), jnp.float32)
    bslab = bslab.at[0, :H].set(p["b_ctx"]).at[0, layout["BO"]:].set(bo)

    return {"wslab": wslab, "bslab": bslab, "layout": layout,
            "H": H, "V": V, "Vp": Vp}


# ----------------------------- forward wrapper ------------------------------

def decoder_forward(prep, input_data, h_hidden, c_hidden, encoder_outputs):
    H, V, Vp = prep["H"], prep["V"], prep["Vp"]
    L = prep["layout"]
    wslab, bslab = prep["wslab"], prep["bslab"]
    cdt = wslab.dtype
    T, B = input_data.shape
    H2, H8 = 2 * H, 8 * H
    TB = T * B

    # Tiny pre-call glue (once per call): flatten ids t-major, dir-major state.
    # In an autoregressive loop the state would stay (B, 2H) between steps.
    ids = input_data.reshape(TB, 1)
    h0c = jnp.transpose(h_hidden, (1, 0, 2)).reshape(B, H2)
    c0c = jnp.transpose(c_hidden, (1, 0, 2)).reshape(B, H2)

    def kernel(ids_ref, h0_ref, c0_ref, enc_ref, w_ref, b_ref,
               pred_ref, hn_ref, cn_ref):
        # --- in-kernel embedding lookup + hoisted input projection ------------
        # one-hot (TB, V) @ (V, 8H) per direction; reverse-time handled later by
        # a static row slice, so there is no per-step select at all.
        col = lax.broadcasted_iota(jnp.int32, (TB, V), 1)
        oh = (col == ids_ref[...]).astype(cdt)                         # (TB, V) exact 0/1
        gxf = jnp.dot(oh, w_ref[:V, L["EXF"]:L["EXF"] + H8],
                      preferred_element_type=jnp.float32)              # fwd proj + full bias
        gxr = jnp.dot(oh, w_ref[:V, L["EXR"]:L["EXR"] + H8],
                      preferred_element_type=jnp.float32)              # rev proj (rev cols only)

        # --- BiLSTM: both directions in one packed recurrence -----------------
        whh = w_ref[:H2, L["WHH"]:L["WHH"] + H8]                       # (2H, 8H) block-diag
        h_cat = h0_ref[...]                                            # (B, 2H) dir-major
        c_cat = c0_ref[...]                                            # f32 state
        for t in range(T):                                             # static T -> unrolled
            rt = T - 1 - t
            gates = (gxf[t * B:(t + 1) * B, :]
                     + gxr[rt * B:(rt + 1) * B, :]
                     + jnp.dot(h_cat.astype(cdt), whh,
                               preferred_element_type=jnp.float32))    # (B, 8H)
            i = jax.nn.sigmoid(gates[:, 0:H2])
            f = jax.nn.sigmoid(gates[:, H2:2 * H2])
            g = jnp.tanh(gates[:, 2 * H2:3 * H2])
            o = jax.nn.sigmoid(gates[:, 3 * H2:4 * H2])
            c_cat = f * c_cat + i * g
            h_cat = o * jnp.tanh(c_cat)
        hn_ref[...] = h_cat                                            # single (B,2H) store
        cn_ref[...] = c_cat

        # --- attention over encoder time (Inter bias dropped: softmax-invariant)
        enc = enc_ref[...]                                             # (Te, B, 2H)
        q = jnp.dot(h_cat.astype(cdt), w_ref[:H2, L["WIQ"]:L["WIQ"] + H2],
                    preferred_element_type=jnp.float32)                # (B, 2H)
        scores = jnp.sum(enc * q[None, :, :], axis=-1, keepdims=True)  # (Te, B, 1)
        m = jnp.max(scores, axis=0, keepdims=True)
        e = jnp.exp(scores - m)
        attn = e * pl.reciprocal(jnp.sum(e, axis=0, keepdims=True), approx=True)
        ctx = jnp.sum(attn * enc, axis=0)                              # (B, 2H)

        # --- Context_comb (+tanh), output head, log_softmax -------------------
        h_tilde = jnp.tanh(
            jnp.dot(ctx.astype(cdt), w_ref[:H2, L["WCC"]:L["WCC"] + H],
                    preferred_element_type=jnp.float32)
            + jnp.dot(h_cat.astype(cdt), w_ref[:H2, L["WCH"]:L["WCH"] + H],
                      preferred_element_type=jnp.float32)
            + b_ref[:, L["BC"]:L["BC"] + H])                           # (B, H)
        logits = (jnp.dot(h_tilde.astype(cdt), w_ref[:H, L["WO"]:L["WO"] + Vp],
                          preferred_element_type=jnp.float32)
                  + b_ref[:, L["BO"]:L["BO"] + Vp])                    # (B, Vp) padded
        mx = jnp.max(logits, axis=-1, keepdims=True)
        lse = jnp.log(jnp.sum(jnp.exp(logits - mx), axis=-1, keepdims=True)) + mx
        pred_ref[...] = logits - lse                                   # lane-dense (B, 128) store

    # Whole problem in VMEM; no grid / BlockSpecs / pipelining needed.
    pred_pad, hnc, cnc = pl.pallas_call(
        kernel,
        out_shape=[
            jax.ShapeDtypeStruct((B, Vp), jnp.float32),
            jax.ShapeDtypeStruct((B, H2), jnp.float32),
            jax.ShapeDtypeStruct((B, H2), jnp.float32),
        ],
    )(ids, h0c, c0c, encoder_outputs, wslab, bslab)

    pred = pred_pad[:, :V]
    hn = jnp.transpose(hnc.reshape(B, 2, H), (1, 0, 2))
    cn = jnp.transpose(cnc.reshape(B, 2, H), (1, 0, 2))
    return pred, (hn, cn)


# ------------------------ pure-JAX reference (check) -------------------------

def ref_forward(params, input_data, h_hidden, c_hidden, encoder_outputs):
    V, H = params["embedding"].shape
    T, B = input_data.shape
    emb = params["embedding"][input_data]                                # (T, B, H)

    def run_dir(x, wih, whh, bih, bhh, h0, c0):
        h, c = h0, c0
        for t in range(x.shape[0]):
            gates = x[t] @ wih.T + bih + h @ whh.T + bhh
            i, f, g, o = jnp.split(gates, 4, axis=1)
            i, f, o = jax.nn.sigmoid(i), jax.nn.sigmoid(f), jax.nn.sigmoid(o)
            g = jnp.tanh(g)
            c = f * c + i * g
            h = o * jnp.tanh(c)
        return h, c

    hf, cf = run_dir(emb, params["w_ih_f"], params["w_hh_f"],
                     params["b_ih_f"], params["b_hh_f"], h_hidden[0], c_hidden[0])
    hr, cr = run_dir(emb[::-1], params["w_ih_r"], params["w_hh_r"],
                     params["b_ih_r"], params["b_hh_r"], h_hidden[1], c_hidden[1])
    hn = jnp.stack([hf, hr]); cn = jnp.stack([cf, cr])

    hid = jnp.transpose(hn, (1, 2, 0)).reshape(B, 2 * H, 1)
    lr = jnp.einsum("tbe,fe->btf", encoder_outputs, params["w_inter"]) + params["b_inter"]
    scores = lr @ hid                                                    # (B, Te, 1)
    attn = jax.nn.softmax(scores, axis=1)
    conmat = jnp.transpose(encoder_outputs, (1, 2, 0)) @ attn            # (B, 2H, 1)
    feat = jnp.concatenate([conmat, hid], axis=1).reshape(B, -1)         # (B, 4H)
    h_tilde = jnp.tanh(feat @ params["w_ctx"].T + params["b_ctx"])
    pred = jax.nn.log_softmax(h_tilde @ params["w_out"].T + params["b_out"], axis=1)
    return pred, (hn, cn)


# ----------------------------------- main ------------------------------------

if __name__ == "__main__":
    H = 32      # hidden_shape
    V = 64      # output_shape (vocab size)
    T = 4       # decoder sequence length
    B = 2       # batch
    Te = 8      # encoder sequence length

    key = jax.random.PRNGKey(0)
    ks = jax.random.split(key, 20)
    s = 0.1
    params = {
        "embedding": jax.random.normal(ks[0], (V, H), jnp.float32),
        "w_ih_f": s * jax.random.normal(ks[1], (4 * H, H), jnp.float32),
        "w_hh_f": s * jax.random.normal(ks[2], (4 * H, H), jnp.float32),
        "b_ih_f": s * jax.random.normal(ks[3], (4 * H,), jnp.float32),
        "b_hh_f": s * jax.random.normal(ks[4], (4 * H,), jnp.float32),
        "w_ih_r": s * jax.random.normal(ks[5], (4 * H, H), jnp.float32),
        "w_hh_r": s * jax.random.normal(ks[6], (4 * H, H), jnp.float32),
        "b_ih_r": s * jax.random.normal(ks[7], (4 * H,), jnp.float32),
        "b_hh_r": s * jax.random.normal(ks[8], (4 * H,), jnp.float32),
        "w_inter": s * jax.random.normal(ks[9], (2 * H, 2 * H), jnp.float32),
        "b_inter": s * jax.random.normal(ks[10], (2 * H,), jnp.float32),
        "w_ctx": s * jax.random.normal(ks[11], (H, 4 * H), jnp.float32),
        "b_ctx": s * jax.random.normal(ks[12], (H,), jnp.float32),
        "w_out": s * jax.random.normal(ks[13], (V, H), jnp.float32),
        "b_out": s * jax.random.normal(ks[14], (V,), jnp.float32),
    }
    input_data = jax.random.randint(ks[15], (T, B), 0, V, dtype=jnp.int32)
    h_hidden = s * jax.random.normal(ks[16], (2, B, H), jnp.float32)
    c_hidden = s * jax.random.normal(ks[17], (2, B, H), jnp.float32)
    encoder_outputs = jax.random.normal(ks[18], (Te, B, 2 * H), jnp.float32)

    prep = prepare_decoder_params(params)                  # one-time weight packing (bf16 slab)
    fwd = jax.jit(functools.partial(decoder_forward, prep))
    pred, (hn, cn) = jax.block_until_ready(
        fwd(input_data, h_hidden, c_hidden, encoder_outputs))

    pred_r, (hn_r, cn_r) = ref_forward(params, input_data, h_hidden, c_hidden,
                                       encoder_outputs)
    # Tolerance widened slightly vs an all-f32 kernel: MXU operands are bf16
    # (accumulation and state stay f32) per the perf review; errors measured at
    # the few-1e-3 level, well inside 1e-2.
    np.testing.assert_allclose(np.asarray(hn), np.asarray(hn_r), rtol=1e-2, atol=1e-2)
    np.testing.assert_allclose(np.asarray(cn), np.asarray(cn_r), rtol=1e-2, atol=1e-2)
    np.testing.assert_allclose(np.asarray(pred), np.asarray(pred_r), rtol=1e-2, atol=1e-2)

    print("KERNEL_OK")
</pallas_src>

<mosaic_0001>
module attributes {stable_mosaic.version = 11 : i64} {
  func.func @kernel(%arg0: memref<8x1xi32, #tpu.memory_space<vmem>>, %arg1: memref<2x64xf32, #tpu.memory_space<vmem>>, %arg2: memref<2x64xf32, #tpu.memory_space<vmem>>, %arg3: memref<8x2x64xf32, #tpu.memory_space<vmem>>, %arg4: memref<64x1280xbf16, #tpu.memory_space<vmem>>, %arg5: memref<1x256xf32, #tpu.memory_space<vmem>>, %arg6: memref<2x128xf32, #tpu.memory_space<vmem>>, %arg7: memref<2x64xf32, #tpu.memory_space<vmem>>, %arg8: memref<2x64xf32, #tpu.memory_space<vmem>>) attributes {dimension_semantics = [], scalar_prefetch = 0 : i64, scratch_operands = 0 : i64, tpu.core_type = #tpu.core_type<tc>} {
    %0 = tpu.iota {dimensions = array<i32: 1>} : vector<8x64xi32>
    %c0 = arith.constant 0 : index
    %c0_0 = arith.constant 0 : index
    %1 = vector.load %arg0[%c0, %c0_0] : memref<8x1xi32, #tpu.memory_space<vmem>>, vector<8x1xi32>
    %2 = vector.broadcast %1 : vector<8x1xi32> to vector<8x64xi32>
    %3 = arith.cmpi eq, %0, %2 : vector<8x64xi32>
    %4 = arith.extui %3 : vector<8x64xi1> to vector<8x64xi32>
    %5 = arith.sitofp %4 : vector<8x64xi32> to vector<8x64xf32>
    %6 = arith.truncf %5 : vector<8x64xf32> to vector<8x64xbf16>
    %c0_1 = arith.constant 0 : index
    %c0_2 = arith.constant 0 : index
    %7 = vector.load %arg4[%c0_1, %c0_2] : memref<64x1280xbf16, #tpu.memory_space<vmem>>, vector<64x256xbf16>
    %cst = arith.constant dense<0.000000e+00> : vector<8x256xf32>
    %8 = tpu.matmul %6, %7, %cst {dimension_numbers = #tpu.dot_dimension_numbers<[1], [0], [0], [1], [0, 0, 1, 1], [], []>} : vector<8x64xbf16>, vector<64x256xbf16>, vector<8x256xf32> -> vector<8x256xf32>
    %c0_3 = arith.constant 0 : index
    %c256 = arith.constant 256 : index
    %9 = vector.load %arg4[%c0_3, %c256] : memref<64x1280xbf16, #tpu.memory_space<vmem>>, vector<64x256xbf16>
    %cst_4 = arith.constant dense<0.000000e+00> : vector<8x256xf32>
    %10 = tpu.matmul %6, %9, %cst_4 {dimension_numbers = #tpu.dot_dimension_numbers<[1], [0], [0], [1], [0, 0, 1, 1], [], []>} : vector<8x64xbf16>, vector<64x256xbf16>, vector<8x256xf32> -> vector<8x256xf32>
    %c0_5 = arith.constant 0 : index
    %c512 = arith.constant 512 : index
    %11 = vector.load %arg4[%c0_5, %c512] : memref<64x1280xbf16, #tpu.memory_space<vmem>>, vector<64x256xbf16>
    %c0_6 = arith.constant 0 : index
    %c0_7 = arith.constant 0 : index
    %12 = vector.load %arg1[%c0_6, %c0_7] : memref<2x64xf32, #tpu.memory_space<vmem>>, vector<2x64xf32>
    %c0_8 = arith.constant 0 : index
    %c0_9 = arith.constant 0 : index
    %13 = vector.load %arg2[%c0_8, %c0_9] : memref<2x64xf32, #tpu.memory_space<vmem>>, vector<2x64xf32>
    %14 = vector.extract_strided_slice %8 {offsets = [0, 0], sizes = [2, 256], strides = [1, 1]} : vector<8x256xf32> to vector<2x256xf32>
    %15 = vector.extract_strided_slice %10 {offsets = [6, 0], sizes = [2, 256], strides = [1, 1]} : vector<8x256xf32> to vector<2x256xf32>
    %16 = arith.addf %14, %15 : vector<2x256xf32>
    %17 = arith.truncf %12 : vector<2x64xf32> to vector<2x64xbf16>
    %cst_10 = arith.constant dense<0.000000e+00> : vector<2x256xf32>
    %18 = tpu.matmul %17, %11, %cst_10 {dimension_numbers = #tpu.dot_dimension_numbers<[1], [0], [0], [1], [0, 0, 1, 1], [], []>} : vector<2x64xbf16>, vector<64x256xbf16>, vector<2x256xf32> -> vector<2x256xf32>
    %19 = arith.addf %16, %18 : vector<2x256xf32>
    %20 = vector.extract_strided_slice %19 {offsets = [0, 0], sizes = [2, 64], strides = [1, 1]} : vector<2x256xf32> to vector<2x64xf32>
    %21 = arith.negf %20 : vector<2x64xf32>
    %22 = math.exp %21 : vector<2x64xf32>
    %cst_11 = arith.constant 1.000000e+00 : f32
    %23 = vector.broadcast %cst_11 : f32 to vector<2x64xf32>
    %24 = arith.addf %23, %22 : vector<2x64xf32>
    %25 = arith.divf %23, %24 : vector<2x64xf32>
    %26 = vector.extract_strided_slice %19 {offsets = [0, 64], sizes = [2, 64], strides = [1, 1]} : vector<2x256xf32> to vector<2x64xf32>
    %27 = arith.negf %26 : vector<2x64xf32>
    %28 = math.exp %27 : vector<2x64xf32>
    %cst_12 = arith.constant 1.000000e+00 : f32
    %29 = vector.broadcast %cst_12 : f32 to vector<2x64xf32>
    %30 = arith.addf %29, %28 : vector<2x64xf32>
    %31 = arith.divf %29, %30 : vector<2x64xf32>
    %32 = vector.extract_strided_slice %19 {offsets = [0, 128], sizes = [2, 64], strides = [1, 1]} : vector<2x256xf32> to vector<2x64xf32>
    %33 = math.tanh %32 : vector<2x64xf32>
    %34 = vector.extract_strided_slice %19 {offsets = [0, 192], sizes = [2, 64], strides = [1, 1]} : vector<2x256xf32> to vector<2x64xf32>
    %35 = arith.negf %34 : vector<2x64xf32>
    %36 = math.exp %35 : vector<2x64xf32>
    %cst_13 = arith.constant 1.000000e+00 : f32
    %37 = vector.broadcast %cst_13 : f32 to vector<2x64xf32>
    %38 = arith.addf %37, %36 : vector<2x64xf32>
    %39 = arith.divf %37, %38 : vector<2x64xf32>
    %40 = arith.mulf %31, %13 : vector<2x64xf32>
    %41 = arith.mulf %25, %33 : vector<2x64xf32>
    %42 = arith.addf %40, %41 : vector<2x64xf32>
    %43 = math.tanh %42 : vector<2x64xf32>
    %44 = arith.mulf %39, %43 : vector<2x64xf32>
    %45 = vector.extract_strided_slice %8 {offsets = [2, 0], sizes = [2, 256], strides = [1, 1]} : vector<8x256xf32> to vector<2x256xf32>
    %46 = vector.extract_strided_slice %10 {offsets = [4, 0], sizes = [2, 256], strides = [1, 1]} : vector<8x256xf32> to vector<2x256xf32>
    %47 = arith.addf %45, %46 : vector<2x256xf32>
    %48 = arith.truncf %44 : vector<2x64xf32> to vector<2x64xbf16>
    %cst_14 = arith.constant dense<0.000000e+00> : vector<2x256xf32>
    %49 = tpu.matmul %48, %11, %cst_14 {dimension_numbers = #tpu.dot_dimension_numbers<[1], [0], [0], [1], [0, 0, 1, 1], [], []>} : vector<2x64xbf16>, vector<64x256xbf16>, vector<2x256xf32> -> vector<2x256xf32>
    %50 = arith.addf %47, %49 : vector<2x256xf32>
    %51 = vector.extract_strided_slice %50 {offsets = [0, 0], sizes = [2, 64], strides = [1, 1]} : vector<2x256xf32> to vector<2x64xf32>
    %52 = arith.negf %51 : vector<2x64xf32>
    %53 = math.exp %52 : vector<2x64xf32>
    %cst_15 = arith.constant 1.000000e+00 : f32
    %54 = vector.broadcast %cst_15 : f32 to vector<2x64xf32>
    %55 = arith.addf %54, %53 : vector<2x64xf32>
    %56 = arith.divf %54, %55 : vector<2x64xf32>
    %57 = vector.extract_strided_slice %50 {offsets = [0, 64], sizes = [2, 64], strides = [1, 1]} : vector<2x256xf32> to vector<2x64xf32>
    %58 = arith.negf %57 : vector<2x64xf32>
    %59 = math.exp %58 : vector<2x64xf32>
    %cst_16 = arith.constant 1.000000e+00 : f32
    %60 = vector.broadcast %cst_16 : f32 to vector<2x64xf32>
    %61 = arith.addf %60, %59 : vector<2x64xf32>
    %62 = arith.divf %60, %61 : vector<2x64xf32>
    %63 = vector.extract_strided_slice %50 {offsets = [0, 128], sizes = [2, 64], strides = [1, 1]} : vector<2x256xf32> to vector<2x64xf32>
    %64 = math.tanh %63 : vector<2x64xf32>
    %65 = vector.extract_strided_slice %50 {offsets = [0, 192], sizes = [2, 64], strides = [1, 1]} : vector<2x256xf32> to vector<2x64xf32>
    %66 = arith.negf %65 : vector<2x64xf32>
    %67 = math.exp %66 : vector<2x64xf32>
    %cst_17 = arith.constant 1.000000e+00 : f32
    %68 = vector.broadcast %cst_17 : f32 to vector<2x64xf32>
    %69 = arith.addf %68, %67 : vector<2x64xf32>
    %70 = arith.divf %68, %69 : vector<2x64xf32>
    %71 = arith.mulf %62, %42 : vector<2x64xf32>
    %72 = arith.mulf %56, %64 : vector<2x64xf32>
    %73 = arith.addf %71, %72 : vector<2x64xf32>
    %74 = math.tanh %73 : vector<2x64xf32>
    %75 = arith.mulf %70, %74 : vector<2x64xf32>
    %76 = vector.extract_strided_slice %8 {offsets = [4, 0], sizes = [2, 256], strides = [1, 1]} : vector<8x256xf32> to vector<2x256xf32>
    %77 = vector.extract_strided_slice %10 {offsets = [2, 0], sizes = [2, 256], strides = [1, 1]} : vector<8x256xf32> to vector<2x256xf32>
    %78 = arith.addf %76, %77 : vector<2x256xf32>
    %79 = arith.truncf %75 : vector<2x64xf32> to vector<2x64xbf16>
    %cst_18 = arith.constant dense<0.000000e+00> : vector<2x256xf32>
    %80 = tpu.matmul %79, %11, %cst_18 {dimension_numbers = #tpu.dot_dimension_numbers<[1], [0], [0], [1], [0, 0, 1, 1], [], []>} : vector<2x64xbf16>, vector<64x256xbf16>, vector<2x256xf32> -> vector<2x256xf32>
    %81 = arith.addf %78, %80 : vector<2x256xf32>
    %82 = vector.extract_strided_slice %81 {offsets = [0, 0], sizes = [2, 64], strides = [1, 1]} : vector<2x256xf32> to vector<2x64xf32>
    %83 = arith.negf %82 : vector<2x64xf32>
    %84 = math.exp %83 : vector<2x64xf32>
    %cst_19 = arith.constant 1.000000e+00 : f32
    %85 = vector.broadcast %cst_19 : f32 to vector<2x64xf32>
    %86 = arith.addf %85, %84 : vector<2x64xf32>
    %87 = arith.divf %85, %86 : vector<2x64xf32>
    %88 = vector.extract_strided_slice %81 {offsets = [0, 64], sizes = [2, 64], strides = [1, 1]} : vector<2x256xf32> to vector<2x64xf32>
    %89 = arith.negf %88 : vector<2x64xf32>
    %90 = math.exp %89 : vector<2x64xf32>
    %cst_20 = arith.constant 1.000000e+00 : f32
    %91 = vector.broadcast %cst_20 : f32 to vector<2x64xf32>
    %92 = arith.addf %91, %90 : vector<2x64xf32>
    %93 = arith.divf %91, %92 : vector<2x64xf32>
    %94 = vector.extract_strided_slice %81 {offsets = [0, 128], sizes = [2, 64], strides = [1, 1]} : vector<2x256xf32> to vector<2x64xf32>
    %95 = math.tanh %94 : vector<2x64xf32>
    %96 = vector.extract_strided_slice %81 {offsets = [0, 192], sizes = [2, 64], strides = [1, 1]} : vector<2x256xf32> to vector<2x64xf32>
    %97 = arith.negf %96 : vector<2x64xf32>
    %98 = math.exp %97 : vector<2x64xf32>
    %cst_21 = arith.constant 1.000000e+00 : f32
    %99 = vector.broadcast %cst_21 : f32 to vector<2x64xf32>
    %100 = arith.addf %99, %98 : vector<2x64xf32>
    %101 = arith.divf %99, %100 : vector<2x64xf32>
    %102 = arith.mulf %93, %73 : vector<2x64xf32>
    %103 = arith.mulf %87, %95 : vector<2x64xf32>
    %104 = arith.addf %102, %103 : vector<2x64xf32>
    %105 = math.tanh %104 : vector<2x64xf32>
    %106 = arith.mulf %101, %105 : vector<2x64xf32>
    %107 = vector.extract_strided_slice %8 {offsets = [6, 0], sizes = [2, 256], strides = [1, 1]} : vector<8x256xf32> to vector<2x256xf32>
    %108 = vector.extract_strided_slice %10 {offsets = [0, 0], sizes = [2, 256], strides = [1, 1]} : vector<8x256xf32> to vector<2x256xf32>
    %109 = arith.addf %107, %108 : vector<2x256xf32>
    %110 = arith.truncf %106 : vector<2x64xf32> to vector<2x64xbf16>
    %cst_22 = arith.constant dense<0.000000e+00> : vector<2x256xf32>
    %111 = tpu.matmul %110, %11, %cst_22 {dimension_numbers = #tpu.dot_dimension_numbers<[1], [0], [0], [1], [0, 0, 1, 1], [], []>} : vector<2x64xbf16>, vector<64x256xbf16>, vector<2x256xf32> -> vector<2x256xf32>
    %112 = arith.addf %109, %111 : vector<2x256xf32>
    %113 = vector.extract_strided_slice %112 {offsets = [0, 0], sizes = [2, 64], strides = [1, 1]} : vector<2x256xf32> to vector<2x64xf32>
    %114 = arith.negf %113 : vector<2x64xf32>
    %115 = math.exp %114 : vector<2x64xf32>
    %cst_23 = arith.constant 1.000000e+00 : f32
    %116 = vector.broadcast %cst_23 : f32 to vector<2x64xf32>
    %117 = arith.addf %116, %115 : vector<2x64xf32>
    %118 = arith.divf %116, %117 : vector<2x64xf32>
    %119 = vector.extract_strided_slice %112 {offsets = [0, 64], sizes = [2, 64], strides = [1, 1]} : vector<2x256xf32> to vector<2x64xf32>
    %120 = arith.negf %119 : vector<2x64xf32>
    %121 = math.exp %120 : vector<2x64xf32>
    %cst_24 = arith.constant 1.000000e+00 : f32
    %122 = vector.broadcast %cst_24 : f32 to vector<2x64xf32>
    %123 = arith.addf %122, %121 : vector<2x64xf32>
    %124 = arith.divf %122, %123 : vector<2x64xf32>
    %125 = vector.extract_strided_slice %112 {offsets = [0, 128], sizes = [2, 64], strides = [1, 1]} : vector<2x256xf32> to vector<2x64xf32>
    %126 = math.tanh %125 : vector<2x64xf32>
    %127 = vector.extract_strided_slice %112 {offsets = [0, 192], sizes = [2, 64], strides = [1, 1]} : vector<2x256xf32> to vector<2x64xf32>
    %128 = arith.negf %127 : vector<2x64xf32>
    %129 = math.exp %128 : vector<2x64xf32>
    %cst_25 = arith.constant 1.000000e+00 : f32
    %130 = vector.broadcast %cst_25 : f32 to vector<2x64xf32>
    %131 = arith.addf %130, %129 : vector<2x64xf32>
    %132 = arith.divf %130, %131 : vector<2x64xf32>
    %133 = arith.mulf %124, %104 : vector<2x64xf32>
    %134 = arith.mulf %118, %126 : vector<2x64xf32>
    %135 = arith.addf %133, %134 : vector<2x64xf32>
    %136 = math.tanh %135 : vector<2x64xf32>
    %137 = arith.mulf %132, %136 : vector<2x64xf32>
    %c0_26 = arith.constant 0 : index
    %c0_27 = arith.constant 0 : index
    %138 = vector.load %arg7[%c0_26, %c0_27] : memref<2x64xf32, #tpu.memory_space<vmem>>, vector<2x64xf32>
    tpu.vector_store %arg7[%c0_26, %c0_27], %137 {strides = array<i32>} : memref<2x64xf32, #tpu.memory_space<vmem>>, vector<2x64xf32>,
    %c0_28 = arith.constant 0 : index
    %c0_29 = arith.constant 0 : index
    %139 = vector.load %arg8[%c0_28, %c0_29] : memref<2x64xf32, #tpu.memory_space<vmem>>, vector<2x64xf32>
    tpu.vector_store %arg8[%c0_28, %c0_29], %135 {strides = array<i32>} : memref<2x64xf32, #tpu.memory_space<vmem>>, vector<2x64xf32>,
    %c0_30 = arith.constant 0 : index
    %c0_31 = arith.constant 0 : index
    %c0_32 = arith.constant 0 : index
    %140 = vector.load %arg3[%c0_30, %c0_31, %c0_32] : memref<8x2x64xf32, #tpu.memory_space<vmem>>, vector<8x2x64xf32>
    %141 = arith.truncf %137 : vector<2x64xf32> to vector<2x64xbf16>
    %c0_33 = arith.constant 0 : index
    %c768 = arith.constant 768 : index
    %142 = vector.load %arg4[%c0_33, %c768] : memref<64x1280xbf16, #tpu.memory_space<vmem>>, vector<64x64xbf16>
    %cst_34 = arith.constant dense<0.000000e+00> : vector<2x64xf32>
    %143 = tpu.matmul %141, %142, %cst_34 {dimension_numbers = #tpu.dot_dimension_numbers<[1], [0], [0], [1], [0, 0, 1, 1], [], []>} : vector<2x64xbf16>, vector<64x64xbf16>, vector<2x64xf32> -> vector<2x64xf32>
    %144 = vector.shape_cast %143 : vector<2x64xf32> to vector<1x2x64xf32>
    %145 = vector.broadcast %144 : vector<1x2x64xf32> to vector<8x2x64xf32>
    %146 = arith.mulf %140, %145 : vector<8x2x64xf32>
    %cst_35 = arith.constant dense<0.000000e+00> : vector<8x2xf32>
    %147 = vector.multi_reduction <add>, %146, %cst_35 [2] : vector<8x2x64xf32> to vector<8x2xf32>
    %148 = vector.shape_cast %147 : vector<8x2xf32> to vector<8x2x1xf32>
    %cst_36 = arith.constant dense<0xFF800000> : vector<2x1xf32>
    %149 = vector.multi_reduction <maximumf>, %148, %cst_36 [0] : vector<8x2x1xf32> to vector<2x1xf32>
    %150 = vector.shape_cast %149 : vector<2x1xf32> to vector<1x2x1xf32>
    %151 = vector.broadcast %150 : vector<1x2x1xf32> to vector<8x2x1xf32>
    %152 = arith.subf %148, %151 : vector<8x2x1xf32>
    %153 = math.exp %152 : vector<8x2x1xf32>
    %cst_37 = arith.constant dense<0.000000e+00> : vector<2x1xf32>
    %154 = vector.multi_reduction <add>, %153, %cst_37 [0] : vector<8x2x1xf32> to vector<2x1xf32>
    %155 = vector.shape_cast %154 : vector<2x1xf32> to vector<1x2x1xf32>
    %156 = tpu.reciprocal %155 {approx = true} : vector<1x2x1xf32> -> vector<1x2x1xf32>
    %157 = vector.broadcast %156 : vector<1x2x1xf32> to vector<8x2x1xf32>
    %158 = arith.mulf %153, %157 : vector<8x2x1xf32>
    %159 = vector.broadcast %158 : vector<8x2x1xf32> to vector<8x2x64xf32>
    %160 = arith.mulf %159, %140 : vector<8x2x64xf32>
    %cst_38 = arith.constant dense<0.000000e+00> : vector<2x64xf32>
    %161 = vector.multi_reduction <add>, %160, %cst_38 [0] : vector<8x2x64xf32> to vector<2x64xf32>
    %162 = arith.truncf %161 : vector<2x64xf32> to vector<2x64xbf16>
    %c0_39 = arith.constant 0 : index
    %c896 = arith.constant 896 : index
    %163 = vector.load %arg4[%c0_39, %c896] : memref<64x1280xbf16, #tpu.memory_space<vmem>>, vector<64x32xbf16>
    %cst_40 = arith.constant dense<0.000000e+00> : vector<2x32xf32>
    %164 = tpu.matmul %162, %163, %cst_40 {dimension_numbers = #tpu.dot_dimension_numbers<[1], [0], [0], [1], [0, 0, 1, 1], [], []>} : vector<2x64xbf16>, vector<64x32xbf16>, vector<2x32xf32> -> vector<2x32xf32>
    %165 = arith.truncf %137 : vector<2x64xf32> to vector<2x64xbf16>
    %c0_41 = arith.constant 0 : index
    %c1024 = arith.constant 1024 : index
    %166 = vector.load %arg4[%c0_41, %c1024] : memref<64x1280xbf16, #tpu.memory_space<vmem>>, vector<64x32xbf16>
    %cst_42 = arith.constant dense<0.000000e+00> : vector<2x32xf32>
    %167 = tpu.matmul %165, %166, %cst_42 {dimension_numbers = #tpu.dot_dimension_numbers<[1], [0], [0], [1], [0, 0, 1, 1], [], []>} : vector<2x64xbf16>, vector<64x32xbf16>, vector<2x32xf32> -> vector<2x32xf32>
    %168 = arith.addf %164, %167 : vector<2x32xf32>
    %c0_43 = arith.constant 0 : index
    %c0_44 = arith.constant 0 : index
    %169 = vector.load %arg5[%c0_43, %c0_44] : memref<1x256xf32, #tpu.memory_space<vmem>>, vector<1x32xf32>
    %170 = vector.broadcast %169 : vector<1x32xf32> to vector<2x32xf32>
    %171 = arith.addf %168, %170 : vector<2x32xf32>
    %172 = math.tanh %171 : vector<2x32xf32>
    %173 = arith.truncf %172 : vector<2x32xf32> to vector<2x32xbf16>
    %c0_45 = arith.constant 0 : index
    %c1152 = arith.constant 1152 : index
    %174 = vector.load %arg4[%c0_45, %c1152] : memref<64x1280xbf16, #tpu.memory_space<vmem>>, vector<32x128xbf16>
    %cst_46 = arith.constant dense<0.000000e+00> : vector<2x128xf32>
    %175 = tpu.matmul %173, %174, %cst_46 {dimension_numbers = #tpu.dot_dimension_numbers<[1], [0], [0], [1], [0, 0, 1, 1], [], []>} : vector<2x32xbf16>, vector<32x128xbf16>, vector<2x128xf32> -> vector<2x128xf32>
    %c0_47 = arith.constant 0 : index
    %c128 = arith.constant 128 : index
    %176 = vector.load %arg5[%c0_47, %c128] : memref<1x256xf32, #tpu.memory_space<vmem>>, vector<1x128xf32>
    %177 = vector.broadcast %176 : vector<1x128xf32> to vector<2x128xf32>
    %178 = arith.addf %175, %177 : vector<2x128xf32>
    %cst_48 = arith.constant dense<0xFF800000> : vector<2xf32>
    %179 = vector.multi_reduction <maximumf>, %178, %cst_48 [1] : vector<2x128xf32> to vector<2xf32>
    %180 = vector.shape_cast %179 : vector<2xf32> to vector<2x1xf32>
    %181 = vector.broadcast %180 : vector<2x1xf32> to vector<2x128xf32>
    %182 = arith.subf %178, %181 : vector<2x128xf32>
    %183 = math.exp %182 : vector<2x128xf32>
    %cst_49 = arith.constant dense<0.000000e+00> : vector<2xf32>
    %184 = vector.multi_reduction <add>, %183, %cst_49 [1] : vector<2x128xf32> to vector<2xf32>
    %185 = vector.shape_cast %184 : vector<2xf32> to vector<2x1xf32>
    %186 = math.log %185 : vector<2x1xf32>
    %187 = arith.addf %186, %180 : vector<2x1xf32>
    %188 = vector.broadcast %187 : vector<2x1xf32> to vector<2x128xf32>
    %189 = arith.subf %178, %188 : vector<2x128xf32>
    %c0_50 = arith.constant 0 : index
    %c0_51 = arith.constant 0 : index
    %190 = vector.load %arg6[%c0_50, %c0_51] : memref<2x128xf32, #tpu.memory_space<vmem>>, vector<2x128xf32>
    tpu.vector_store %arg6[%c0_50, %c0_51], %189 {strides = array<i32>} : memref<2x128xf32, #tpu.memory_space<vmem>>, vector<2x128xf32>,
    return
  }
}

</mosaic_0001>

<llo_original>
// kernel: decoder_forward.1
$region0: #{decoder_forward.1}
  #allocation0 [shape = 'u32[]', space=smem, size = 0x4, offset = 0x4, fixed_abs, tag = 'smem constant byte address 0x4 - core index']
  #allocation1 [shape = 'u32[144,128]{1,0:T(1,128)}', space=vmem, size = 0x12000, scoped, tag = 'internal scratch']
  %s0 = inlined_call_operand.vmem [shape: s32[8,1], index: 0, kind: input, shape index: {}]
  %s1 = inlined_call_operand.vmem [shape: f32[2,64], index: 1, kind: input, shape index: {}]
  %s2 = inlined_call_operand.vmem [shape: f32[2,64], index: 2, kind: input, shape index: {}]
  %s3 = inlined_call_operand.vmem [shape: f32[8,2,64], index: 3, kind: input, shape index: {}]
  %s4 = inlined_call_operand.vmem [shape: bf16[64,1280], index: 4, kind: input, shape index: {}]
  %s5 = inlined_call_operand.vmem [shape: f32[1,256], index: 5, kind: input, shape index: {}]
  %s6 = inlined_call_operand.hbm [shape: f32[2,128], index: 6, kind: output, shape index: {0}]
  %s7 = inlined_call_operand.vmem [shape: f32[2,64], index: 7, kind: output, shape index: {1}]
  %s8 = inlined_call_operand.vmem [shape: f32[2,64], index: 8, kind: output, shape index: {2}]
  %9 = xla_tuple %s6, %s7, %s8
  %s10 = sld [smem:[#allocation0]]
  $region50: #{decoder_forward.1} parent=0
    _
  %s12 = ssub.s32 1, %s10
  %s13 = scalar_select 0, %s12, %s10
  $region1: #{decoder_forward.1} parent=0
    #allocation2 [shape = 'u8[1024]{0}', space=vmem, size = 0x400, scoped, tag = 'output window, operand 0, single buffered']
    #allocation3 [shape = 's32[1]{0}', space=sflag, size = 0x4, scoped, tag = 'scoped memory for decoder_forward.1']
    %14 = vsyncpa [#allocation3], 0
    // Predicated region
    $region2: #{decoder_forward.1} parent=1 // pred_check
      _
    $region3: #{decoder_forward.1} parent=1 // pred_check_branch
      %16 = sbr.rel (0) target = $region5
    $region4: #{decoder_forward.1} parent=1 // pred_region
      _
    $region5: #{decoder_forward.1} parent=1 // pred_fallthru
      _
    // Predicated region
    $region6: #{decoder_forward.1} parent=1 // pred_check
      _
    $region7: #{decoder_forward.1} parent=1 // pred_check_branch
      %18 = sbr.rel (0) target = $region9
    $region8: #{decoder_forward.1} parent=1 // pred_region
      _
    $region9: #{decoder_forward.1} parent=1 // pred_fallthru
      _
    // Predicated region
    $region10: #{decoder_forward.1} parent=1 // pred_check
      _
    $region11: #{decoder_forward.1} parent=1 // pred_check_branch
      %20 = sbr.rel (0) target = $region13
    $region12: #{decoder_forward.1} parent=1 // pred_region
      _
    $region13: #{decoder_forward.1} parent=1 // pred_fallthru
      _
    // Predicated region
    $region14: #{decoder_forward.1} parent=1 // pred_check
      _
    $region15: #{decoder_forward.1} parent=1 // pred_check_branch
      %22 = sbr.rel (0) target = $region17
    $region16: #{decoder_forward.1} parent=1 // pred_region
      _
    $region17: #{decoder_forward.1} parent=1 // pred_fallthru
      _
    // Predicated region
    $region18: #{decoder_forward.1} parent=1 // pred_check
      _
    $region19: #{decoder_forward.1} parent=1 // pred_check_branch
      %24 = sbr.rel (0) target = $region21
    $region20: #{decoder_forward.1} parent=1 // pred_region
      _
    $region21: #{decoder_forward.1} parent=1 // pred_fallthru
      _
    // Predicated region
    $region22: #{decoder_forward.1} parent=1 // pred_check
      _
    $region23: #{decoder_forward.1} parent=1 // pred_check_branch
      %26 = sbr.rel (0) target = $region25
    $region24: #{decoder_forward.1} parent=1 // pred_region
      _
    $region25: #{decoder_forward.1} parent=1 // pred_fallthru
      _
    %v28 = vlaneseq
    %v29 = vand.u32 %v28, 127
    %v30 = vld [vmem:[%s0] sm:$0xff]
    %31 = vset.pattern.permute.xlu0 0
    %32 = vperm.xlu0 %31, %v30
    %v33 = vpop.permute.xlu0 %32
    %vm34 = vcmp.eq.s32.totalorder %v29, %v33
    %v35 = vsel %vm34, 1, 0
    %v36 = vcvt.s32.f32 %v35
    %v37 = vpack.c.bf16 %v36, %v36
    %v38 = vld [vmem:[%s4] sm:$0xff]
    %v39 = vld [vmem:[%s4 + $0x28] sm:$0xff]
    %v40 = vld [vmem:[%s4 + $0x50] sm:$0xff]
    %v41 = vld [vmem:[%s4 + $0x78] sm:$0xff]
    %v42 = vld [vmem:[%s4 + $0xa0] sm:$0xff]
    %v43 = vld [vmem:[%s4 + $0xc8] sm:$0xff]
    %v44 = vld [vmem:[%s4 + $0xf0] sm:$0xff]
    %v45 = vld [vmem:[%s4 + $0x118] sm:$0xff]
    %v54 = vunpack.c.l.b16 %v38
    %v55 = vunpack.c.h.b16 %v38
    %v56 = vunpack.c.l.b16 %v39
    %v57 = vunpack.c.h.b16 %v39
    %v58 = vunpack.c.l.b16 %v40
    %v59 = vunpack.c.h.b16 %v40
    %v60 = vunpack.c.l.b16 %v41
    %v61 = vunpack.c.h.b16 %v41
    %v62 = vunpack.c.l.b16 %v42
    %v63 = vunpack.c.h.b16 %v42
    %v64 = vunpack.c.l.b16 %v43
    %v65 = vunpack.c.h.b16 %v43
    %v66 = vunpack.c.l.b16 %v44
    %v67 = vunpack.c.h.b16 %v44
    %v68 = vunpack.c.l.b16 %v45
    %v69 = vunpack.c.h.b16 %v45
    %v70 = vpack.c.b16 %v56, %v54
    %v71 = vpack.c.b16 %v57, %v55
    %v72 = vpack.c.b16 %v60, %v58
    %v73 = vpack.c.b16 %v61, %v59
    %v74 = vpack.c.b16 %v64, %v62
    %v75 = vpack.c.b16 %v65, %v63
    %v76 = vpack.c.b16 %v68, %v66
    %v77 = vpack.c.b16 %v69, %v67
    %vm86 = vcmask 523264
    %v88 = vsel %vm86, %v37, 0
    %90 = vmatprep.subr.bf16.mxu0 %v71
    %91 = vmatpush1.bf16.msra.mxu0 %v70
    %92 = vmatprep.subr.bf16.mxu0 %v73
    %93 = vmatpush1.bf16.msra.mxu0 %v72
    %94 = vmatprep.subr.bf16.mxu0 %v75
    %95 = vmatpush1.bf16.msra.mxu0 %v74
    %96 = vmatprep.subr.bf16.mxu0 %v77
    %97 = vmatpush1.bf16.msra.mxu0 %v76
    %98 = vmatprep.subr.bf16.mxu0 0
    %99 = vmatpush1.bf16.msra.mxu0 0
    %100 = vmatprep.subr.bf16.mxu0 0
    %101 = vmatpush1.bf16.msra.mxu0 0
    %102 = vmatprep.subr.bf16.mxu0 0
    %103 = vmatpush1.bf16.msra.mxu0 0
    %104 = vmatprep.subr.bf16.mxu0 0
    %105 = vmatpush1.bf16.msra.mxu0 0
    %106 = vmatprep.subr.bf16.mxu0 0
    %107 = vmatpush1.bf16.msra.mxu0 0
    %108 = vmatprep.subr.bf16.mxu0 0
    %109 = vmatpush1.bf16.msra.mxu0 0
    %110 = vmatprep.subr.bf16.mxu0 0
    %111 = vmatpush1.bf16.msra.mxu0 0
    %112 = vmatprep.subr.bf16.mxu0 0
    %113 = vmatpush1.bf16.msra.mxu0 0
    %114 = vmatprep.subr.bf16.mxu0 0
    %115 = vmatpush1.bf16.msra.mxu0 0
    %116 = vmatprep.subr.bf16.mxu0 0
    %117 = vmatpush1.bf16.msra.mxu0 0
    %118 = vmatprep.subr.bf16.mxu0 0
    %119 = vmatpush1.bf16.msra.mxu0 0
    %120 = vmatprep.subr.bf16.mxu0 0
    %121 = vmatpush1.bf16.msra.mxu0 0
    %122 = vmatprep.mubr.bf16.mxu0 0
    %123 = vmatmul.mubr.bf16.gmra.mrb[0].mxu0 %v88
    %v124 = vpop.f32.mrb[0].mxu0
    %v125 = vadd.f32 0.0, %v124
    %v126 = vpop.f32.mrb[0].mxu0
    %v127 = vadd.f32 0.0, %v126
    %v128 = vpop.f32.mrb[0].mxu0
    %v129 = vpop.f32.mrb[0].mxu0
    %130 = vdwg.mxu0
    %v131 = vld [vmem:[%s4 + $0x8] sm:$0xff]
    %v132 = vld [vmem:[%s4 + $0x30] sm:$0xff]
    %v133 = vld [vmem:[%s4 + $0x58] sm:$0xff]
    %v134 = vld [vmem:[%s4 + $0x80] sm:$0xff]
    %v135 = vld [vmem:[%s4 + $0xa8] sm:$0xff]
    %v136 = vld [vmem:[%s4 + $0xd0] sm:$0xff]
    %v137 = vld [vmem:[%s4 + $0xf8] sm:$0xff]
    %v138 = vld [vmem:[%s4 + $0x120] sm:$0xff]
    %v147 = vunpack.c.l.b16 %v131
    %v148 = vunpack.c.h.b16 %v131
    %v149 = vunpack.c.l.b16 %v132
    %v150 = vunpack.c.h.b16 %v132
    %v151 = vunpack.c.l.b16 %v133
    %v152 = vunpack.c.h.b16 %v133
    %v153 = vunpack.c.l.b16 %v134
    %v154 = vunpack.c.h.b16 %v134
    %v155 = vunpack.c.l.b16 %v135
    %v156 = vunpack.c.h.b16 %v135
    %v157 = vunpack.c.l.b16 %v136
    %v158 = vunpack.c.h.b16 %v136
    %v159 = vunpack.c.l.b16 %v137
    %v160 = vunpack.c.h.b16 %v137
    %v161 = vunpack.c.l.b16 %v138
    %v162 = vunpack.c.h.b16 %v138
    %v163 = vpack.c.b16 %v149, %v147
    %v164 = vpack.c.b16 %v150, %v148
    %v165 = vpack.c.b16 %v153, %v151
    %v166 = vpack.c.b16 %v154, %v152
    %v167 = vpack.c.b16 %v157, %v155
    %v168 = vpack.c.b16 %v158, %v156
    %v169 = vpack.c.b16 %v161, %v159
    %v170 = vpack.c.b16 %v162, %v160
    %179 = vmatprep.subr.bf16.mxu0 %v164
    %180 = vmatpush1.bf16.msra.mxu0 %v163
    %181 = vmatprep.subr.bf16.mxu0 %v166
    %182 = vmatpush1.bf16.msra.mxu0 %v165
    %183 = vmatprep.subr.bf16.mxu0 %v168
    %184 = vmatpush1.bf16.msra.mxu0 %v167
    %185 = vmatprep.subr.bf16.mxu0 %v170
    %186 = vmatpush1.bf16.msra.mxu0 %v169
    %187 = vmatprep.subr.bf16.mxu0 0
    %188 = vmatpush1.bf16.msra.mxu0 0
    %189 = vmatprep.subr.bf16.mxu0 0
    %190 = vmatpush1.bf16.msra.mxu0 0
    %191 = vmatprep.subr.bf16.mxu0 0
    %192 = vmatpush1.bf16.msra.mxu0 0
    %193 = vmatprep.subr.bf16.mxu0 0
    %194 = vmatpush1.bf16.msra.mxu0 0
    %195 = vmatprep.subr.bf16.mxu0 0
    %196 = vmatpush1.bf16.msra.mxu0 0
    %197 = vmatprep.subr.bf16.mxu0 0
    %198 = vmatpush1.bf16.msra.mxu0 0
    %199 = vmatprep.subr.bf16.mxu0 0
    %200 = vmatpush1.bf16.msra.mxu0 0
    %201 = vmatprep.subr.bf16.mxu0 0
    %202 = vmatpush1.bf16.msra.mxu0 0
    %203 = vmatprep.subr.bf16.mxu0 0
    %204 = vmatpush1.bf16.msra.mxu0 0
    %205 = vmatprep.subr.bf16.mxu0 0
    %206 = vmatpush1.bf16.msra.mxu0 0
    %207 = vmatprep.subr.bf16.mxu0 0
    %208 = vmatpush1.bf16.msra.mxu0 0
    %209 = vmatprep.subr.bf16.mxu0 0
    %210 = vmatpush1.bf16.msra.mxu0 0
    %211 = vmatprep.mubr.bf16.mxu0 0
    %212 = vmatmul.mubr.bf16.gmra.mrb[0].mxu0 %v88
    %v213 = vpop.f32.mrb[0].mxu0
    %v214 = vadd.f32 0.0, %v213
    %v215 = vpop.f32.mrb[0].mxu0
    %v216 = vadd.f32 0.0, %v215
    %v217 = vpop.f32.mrb[0].mxu0
    %v218 = vpop.f32.mrb[0].mxu0
    %219 = vdwg.mxu0
    %v220 = vld [vmem:[%s4 + $0x10] sm:$0xff]
    %v221 = vld [vmem:[%s4 + $0x38] sm:$0xff]
    %v222 = vld [vmem:[%s4 + $0x60] sm:$0xff]
    %v223 = vld [vmem:[%s4 + $0x88] sm:$0xff]
    %v224 = vld [vmem:[%s4 + $0xb0] sm:$0xff]
    %v225 = vld [vmem:[%s4 + $0xd8] sm:$0xff]
    %v226 = vld [vmem:[%s4 + $0x100] sm:$0xff]
    %v227 = vld [vmem:[%s4 + $0x128] sm:$0xff]
    %v228 = vld [vmem:[%s1] sm:$0x3]
    %v229 = vld [vmem:[%s2] sm:$0x3]
    %v232 = vrot.slane %v214, 6
    %v233 = vrot.slane %v216, 6
    %v236 = vadd.f32 %v125, %v232
    %v237 = vadd.f32 %v127, %v233
    %v238 = vpack.c.bf16 %v228, %v228
    %v247 = vunpack.c.l.b16 %v220
    %v248 = vunpack.c.h.b16 %v220
    %v249 = vunpack.c.l.b16 %v221
    %v250 = vunpack.c.h.b16 %v221
    %v251 = vunpack.c.l.b16 %v222
    %v252 = vunpack.c.h.b16 %v222
    %v253 = vunpack.c.l.b16 %v223
    %v254 = vunpack.c.h.b16 %v223
    %v255 = vunpack.c.l.b16 %v224
    %v256 = vunpack.c.h.b16 %v224
    %v257 = vunpack.c.l.b16 %v225
    %v258 = vunpack.c.h.b16 %v225
    %v259 = vunpack.c.l.b16 %v226
    %v260 = vunpack.c.h.b16 %v226
    %v261 = vunpack.c.l.b16 %v227
    %v262 = vunpack.c.h.b16 %v227
    %v263 = vpack.c.b16 %v249, %v247
    %v264 = vpack.c.b16 %v250, %v248
    %v265 = vpack.c.b16 %v253, %v251
    %v266 = vpack.c.b16 %v254, %v252
    %v267 = vpack.c.b16 %v257, %v255
    %v268 = vpack.c.b16 %v258, %v256
    %v269 = vpack.c.b16 %v261, %v259
    %v270 = vpack.c.b16 %v262, %v260
    %v280 = vsel %vm86, %v238, 0
    %282 = vmatprep.subr.bf16.mxu0 %v264
    %283 = vmatpush1.bf16.msra.mxu0 %v263
    %284 = vmatprep.subr.bf16.mxu0 %v266
    %285 = vmatpush1.bf16.msra.mxu0 %v265
    %286 = vmatprep.subr.bf16.mxu0 %v268
    %287 = vmatpush1.bf16.msra.mxu0 %v267
    %288 = vmatprep.subr.bf16.mxu0 %v270
    %289 = vmatpush1.bf16.msra.mxu0 %v269
    %290 = vmatprep.subr.bf16.mxu0 0
    %291 = vmatpush1.bf16.msra.mxu0 0
    %292 = vmatprep.subr.bf16.mxu0 0
    %293 = vmatpush1.bf16.msra.mxu0 0
    %294 = vmatprep.subr.bf16.mxu0 0
    %295 = vmatpush1.bf16.msra.mxu0 0
    %296 = vmatprep.subr.bf16.mxu0 0
    %297 = vmatpush1.bf16.msra.mxu0 0
    %298 = vmatprep.subr.bf16.mxu0 0
    %299 = vmatpush1.bf16.msra.mxu0 0
    %300 = vmatprep.subr.bf16.mxu0 0
    %301 = vmatpush1.bf16.msra.mxu0 0
    %302 = vmatprep.subr.bf16.mxu0 0
    %303 = vmatpush1.bf16.msra.mxu0 0
    %304 = vmatprep.subr.bf16.mxu0 0
    %305 = vmatpush1.bf16.msra.mxu0 0
    %306 = vmatprep.subr.bf16.mxu0 0
    %307 = vmatpush1.bf16.msra.mxu0 0
    %308 = vmatprep.subr.bf16.mxu0 0
    %309 = vmatpush1.bf16.msra.mxu0 0
    %310 = vmatprep.subr.bf16.mxu0 0
    %311 = vmatpush1.bf16.msra.mxu0 0
    %312 = vmatprep.subr.bf16.mxu0 0
    %313 = vmatpush1.bf16.msra.mxu0 0
    %314 = vmatprep.mubr.bf16.mxu0 0
    %315 = vmatmul.mubr.bf16.gmra.mrb[0].mxu0 %v280
    %v316 = vpop.f32.mrb[0].mxu0
    %v317 = vadd.f32 0.0, %v316
    %v318 = vpop.f32.mrb[0].mxu0
    %v319 = vadd.f32 0.0, %v318
    %v320 = vpop.f32.mrb[0].mxu0
    %v321 = vpop.f32.mrb[0].mxu0
    %322 = vdwg.mxu0
    %v323 = vadd.f32 %v236, %v317
    %v324 = vadd.f32 %v237, %v319
    %v325 = vxor.u32 %v323, 2147483648
    %v326 = vmul.f32 %v325, 1.442695
    %v327 = vpow.pop %v326
    %v328 = vadd.f32 %v327, 1.0
    %v329 = vrcp.pop %v328
    %v330 = vmul.f32 1.0, %v329
    %v331 = vtanh.pop %v324
    %v332 = vxor.u32 %v324, 2147483648
    %v333 = vmul.f32 %v332, 1.442695
    %v334 = vpow.pop %v333
    %v335 = vadd.f32 %v334, 1.0
    %v336 = vrcp.pop %v335
    %v337 = vmul.f32 1.0, %v336
    %339 = vrot.lane.b32.xlu0 %v229, 64
    %v340 = vpop.permute.xlu0 %339
    %v342 = vmul.f32 %v330, %v340
    %v343 = vmul.f32 %v330, %v331
    %345 = vrot.lane.b32.xlu0 %v343, 64
    %v346 = vpop.permute.xlu0 %345
    %v348 = vadd.f32 %v342, %v346
    %v349 = vtanh.pop %v348
    %v350 = vmul.f32 %v337, %v349
    %v351 = vrot.slane %v214, 2
    %v352 = vrot.slane %v216, 2
    %v355 = vadd.f32 %v125, %v351
    %v356 = vadd.f32 %v127, %v352
    %v357 = vpack.c.bf16 %v350, %v350
    %359 = vrot.lane.b32.xlu0 %v357, 64
    %v360 = vpop.permute.xlu0 %359
    %v362 = vsel %vm86, %v360, 0
    %364 = vmatprep.subr.bf16.mxu0 %v264
    %365 = vmatpush1.bf16.msra.mxu0 %v263
    %366 = vmatprep.subr.bf16.mxu0 %v266
    %367 = vmatpush1.bf16.msra.mxu0 %v265
    %368 = vmatprep.subr.bf16.mxu0 %v268
    %369 = vmatpush1.bf16.msra.mxu0 %v267
    %370 = vmatprep.subr.bf16.mxu0 %v270
    %371 = vmatpush1.bf16.msra.mxu0 %v269
    %372 = vmatprep.subr.bf16.mxu0 0
    %373 = vmatpush1.bf16.msra.mxu0 0
    %374 = vmatprep.subr.bf16.mxu0 0
    %375 = vmatpush1.bf16.msra.mxu0 0
    %376 = vmatprep.subr.bf16.mxu0 0
    %377 = vmatpush1.bf16.msra.mxu0 0
    %378 = vmatprep.subr.bf16.mxu0 0
    %379 = vmatpush1.bf16.msra.mxu0 0
    %380 = vmatprep.subr.bf16.mxu0 0
    %381 = vmatpush1.bf16.msra.mxu0 0
    %382 = vmatprep.subr.bf16.mxu0 0
    %383 = vmatpush1.bf16.msra.mxu0 0
    %384 = vmatprep.subr.bf16.mxu0 0
    %385 = vmatpush1.bf16.msra.mxu0 0
    %386 = vmatprep.subr.bf16.mxu0 0
    %387 = vmatpush1.bf16.msra.mxu0 0
    %388 = vmatprep.subr.bf16.mxu0 0
    %389 = vmatpush1.bf16.msra.mxu0 0
    %390 = vmatprep.subr.bf16.mxu0 0
    %391 = vmatpush1.bf16.msra.mxu0 0
    %392 = vmatprep.subr.bf16.mxu0 0
    %393 = vmatpush1.bf16.msra.mxu0 0
    %394 = vmatprep.subr.bf16.mxu0 0
    %395 = vmatpush1.bf16.msra.mxu0 0
    %396 = vmatprep.mubr.bf16.mxu0 0
    %397 = vmatmul.mubr.bf16.gmra.mrb[0].mxu0 %v362
    %v398 = vpop.f32.mrb[0].mxu0
    %v399 = vadd.f32 0.0, %v398
    %v400 = vpop.f32.mrb[0].mxu0
    %v401 = vadd.f32 0.0, %v400
    %v402 = vpop.f32.mrb[0].mxu0
    %v403 = vpop.f32.mrb[0].mxu0
    %404 = vdwg.mxu0
    %v407 = vrot.slane %v399, 6
    %v408 = vrot.slane %v401, 6
    %v411 = vadd.f32 %v355, %v407
    %v412 = vadd.f32 %v356, %v408
    %v413 = vxor.u32 %v411, 2147483648
    %v414 = vmul.f32 %v413, 1.442695
    %v415 = vpow.pop %v414
    %v416 = vadd.f32 %v415, 1.0
    %v417 = vrcp.pop %v416
    %v418 = vmul.f32 1.0, %v417
    %v419 = vtanh.pop %v412
    %v420 = vxor.u32 %v412, 2147483648
    %v421 = vmul.f32 %v420, 1.442695
    %v422 = vpow.pop %v421
    %v423 = vadd.f32 %v422, 1.0
    %v424 = vrcp.pop %v423
    %v425 = vmul.f32 1.0, %v424
    %v427 = vrot.slane %v348, 6
    %v429 = vmul.f32 %v418, %v427
    %v430 = vmul.f32 %v418, %v419
    %432 = vrot.lane.b32.xlu0 %v430, 64
    %v433 = vpop.permute.xlu0 %432
    %v435 = vadd.f32 %v429, %v433
    %v436 = vtanh.pop %v435
    %v437 = vmul.f32 %v425, %v436
    %v438 = vpack.c.bf16 %v437, %v437
    %v440 = vrot.slane %v438, 1
    %441 = vrot.lane.b32.xlu0 %v440, 64
    %v442 = vpop.permute.xlu0 %441
    %v444 = vsel %vm86, %v442, 0
    %446 = vmatprep.subr.bf16.mxu0 %v264
    %447 = vmatpush1.bf16.msra.mxu0 %v263
    %448 = vmatprep.subr.bf16.mxu0 %v266
    %449 = vmatpush1.bf16.msra.mxu0 %v265
    %450 = vmatprep.subr.bf16.mxu0 %v268
    %451 = vmatpush1.bf16.msra.mxu0 %v267
    %452 = vmatprep.subr.bf16.mxu0 %v270
    %453 = vmatpush1.bf16.msra.mxu0 %v269
    %454 = vmatprep.subr.bf16.mxu0 0
    %455 = vmatpush1.bf16.msra.mxu0 0
    %456 = vmatprep.subr.bf16.mxu0 0
    %457 = vmatpush1.bf16.msra.mxu0 0
    %458 = vmatprep.subr.bf16.mxu0 0
    %459 = vmatpush1.bf16.msra.mxu0 0
    %460 = vmatprep.subr.bf16.mxu0 0
    %461 = vmatpush1.bf16.msra.mxu0 0
    %462 = vmatprep.subr.bf16.mxu0 0
    %463 = vmatpush1.bf16.msra.mxu0 0
    %464 = vmatprep.subr.bf16.mxu0 0
    %465 = vmatpush1.bf16.msra.mxu0 0
    %466 = vmatprep.subr.bf16.mxu0 0
    %467 = vmatpush1.bf16.msra.mxu0 0
    %468 = vmatprep.subr.bf16.mxu0 0
    %469 = vmatpush1.bf16.msra.mxu0 0
    %470 = vmatprep.subr.bf16.mxu0 0
    %471 = vmatpush1.bf16.msra.mxu0 0
    %472 = vmatprep.subr.bf16.mxu0 0
    %473 = vmatpush1.bf16.msra.mxu0 0
    %474 = vmatprep.subr.bf16.mxu0 0
    %475 = vmatpush1.bf16.msra.mxu0 0
    %476 = vmatprep.subr.bf16.mxu0 0
    %477 = vmatpush1.bf16.msra.mxu0 0
    %478 = vmatprep.mubr.bf16.mxu0 0
    %479 = vmatmul.mubr.bf16.gmra.mrb[0].mxu0 %v444
    %v480 = vpop.f32.mrb[0].mxu0
    %v481 = vadd.f32 0.0, %v480
    %v482 = vpop.f32.mrb[0].mxu0
    %v483 = vadd.f32 0.0, %v482
    %v484 = vpop.f32.mrb[0].mxu0
    %v485 = vpop.f32.mrb[0].mxu0
    %486 = vdwg.mxu0
    %v489 = vrot.slane %v481, 4
    %v490 = vrot.slane %v483, 4
    %v493 = vadd.f32 %v236, %v489
    %v494 = vadd.f32 %v237, %v490
    %v495 = vxor.u32 %v493, 2147483648
    %v496 = vmul.f32 %v495, 1.442695
    %v497 = vpow.pop %v496
    %v498 = vadd.f32 %v497, 1.0
    %v499 = vrcp.pop %v498
    %v500 = vmul.f32 1.0, %v499
    %v501 = vtanh.pop %v494
    %v502 = vxor.u32 %v494, 2147483648
    %v503 = vmul.f32 %v502, 1.442695
    %v504 = vpow.pop %v503
    %v505 = vadd.f32 %v504, 1.0
    %v506 = vrcp.pop %v505
    %v507 = vmul.f32 1.0, %v506
    %v509 = vrot.slane %v435, 6
    %v511 = vmul.f32 %v500, %v509
    %v512 = vmul.f32 %v500, %v501
    %514 = vrot.lane.b32.xlu0 %v512, 64
    %v515 = vpop.permute.xlu0 %514
    %v517 = vadd.f32 %v511, %v515
    %v518 = vtanh.pop %v517
    %v519 = vmul.f32 %v507, %v518
    %v520 = vpack.c.bf16 %v519, %v519
    %v522 = vrot.slane %v520, 2
    %523 = vrot.lane.b32.xlu0 %v522, 64
    %v524 = vpop.permute.xlu0 %523
    %v526 = vsel %vm86, %v524, 0
    %528 = vmatprep.subr.bf16.mxu0 %v264
    %529 = vmatpush1.bf16.msra.mxu0 %v263
    %530 = vmatprep.subr.bf16.mxu0 %v266
    %531 = vmatpush1.bf16.msra.mxu0 %v265
    %532 = vmatprep.subr.bf16.mxu0 %v268
    %533 = vmatpush1.bf16.msra.mxu0 %v267
    %534 = vmatprep.subr.bf16.mxu0 %v270
    %535 = vmatpush1.bf16.msra.mxu0 %v269
    %536 = vmatprep.subr.bf16.mxu0 0
    %537 = vmatpush1.bf16.msra.mxu0 0
    %538 = vmatprep.subr.bf16.mxu0 0
    %539 = vmatpush1.bf16.msra.mxu0 0
    %540 = vmatprep.subr.bf16.mxu0 0
    %541 = vmatpush1.bf16.msra.mxu0 0
    %542 = vmatprep.subr.bf16.mxu0 0
    %543 = vmatpush1.bf16.msra.mxu0 0
    %544 = vmatprep.subr.bf16.mxu0 0
    %545 = vmatpush1.bf16.msra.mxu0 0
    %546 = vmatprep.subr.bf16.mxu0 0
    %547 = vmatpush1.bf16.msra.mxu0 0
    %548 = vmatprep.subr.bf16.mxu0 0
    %549 = vmatpush1.bf16.msra.mxu0 0
    %550 = vmatprep.subr.bf16.mxu0 0
    %551 = vmatpush1.bf16.msra.mxu0 0
    %552 = vmatprep.subr.bf16.mxu0 0
    %553 = vmatpush1.bf16.msra.mxu0 0
    %554 = vmatprep.subr.bf16.mxu0 0
    %555 = vmatpush1.bf16.msra.mxu0 0
    %556 = vmatprep.subr.bf16.mxu0 0
    %557 = vmatpush1.bf16.msra.mxu0 0
    %558 = vmatprep.subr.bf16.mxu0 0
    %559 = vmatpush1.bf16.msra.mxu0 0
    %560 = vmatprep.mubr.bf16.mxu0 0
    %561 = vmatmul.mubr.bf16.gmra.mrb[0].mxu0 %v526
    %v562 = vpop.f32.mrb[0].mxu0
    %v563 = vadd.f32 0.0, %v562
    %v564 = vpop.f32.mrb[0].mxu0
    %v565 = vadd.f32 0.0, %v564
    %v566 = vpop.f32.mrb[0].mxu0
    %v567 = vpop.f32.mrb[0].mxu0
    %568 = vdwg.mxu0
    %v571 = vrot.slane %v563, 2
    %v572 = vrot.slane %v565, 2
    %v575 = vadd.f32 %v355, %v571
    %v576 = vadd.f32 %v356, %v572
    %v577 = vxor.u32 %v575, 2147483648
    %v578 = vmul.f32 %v577, 1.442695
    %v579 = vpow.pop %v578
    %v580 = vadd.f32 %v579, 1.0
    %v581 = vrcp.pop %v580
    %v582 = vmul.f32 1.0, %v581
    %v583 = vtanh.pop %v576
    %v584 = vxor.u32 %v576, 2147483648
    %v585 = vmul.f32 %v584, 1.442695
    %v586 = vpow.pop %v585
    %v587 = vadd.f32 %v586, 1.0
    %v588 = vrcp.pop %v587
    %v589 = vmul.f32 1.0, %v588
    %v591 = vrot.slane %v517, 6
    %v593 = vmul.f32 %v582, %v591
    %v594 = vmul.f32 %v582, %v583
    %596 = vrot.lane.b32.xlu0 %v594, 64
    %v597 = vpop.permute.xlu0 %596
    %v599 = vadd.f32 %v593, %v597
    %v600 = vtanh.pop %v599
    %v601 = vmul.f32 %v589, %v600
    %603 = vrot.lane.b32.xlu0 %v601, 64
    %v604 = vpop.permute.xlu0 %603
    %vm606 = vcmask 523270
    %607 = vst.msk [vmem:[%s7 - $0x6] sm:$0xc0] %vm606, %v604
    %609 = vrot.lane.b32.xlu0 %v599, 64
    %v610 = vpop.permute.xlu0 %609
    %612 = vst.msk [vmem:[%s8 - $0x6] sm:$0xc0] %vm606, %v610
    %v613 = vld [vmem:[%s3] sm:$0x3]
    %v614 = vld [vmem:[%s3 + $0x2] sm:$0x3]
    %v615 = vld [vmem:[%s3 + $0x4] sm:$0x3]
    %v616 = vld [vmem:[%s3 + $0x6] sm:$0x3]
    %v617 = vld [vmem:[%s3 + $0x8] sm:$0x3]
    %v618 = vld [vmem:[%s3 + $0xa] sm:$0x3]
    %v619 = vld [vmem:[%s3 + $0xc] sm:$0x3]
    %v620 = vld [vmem:[%s3 + $0xe] sm:$0x3]
    %v621 = vpack.c.bf16 %v601, %v601
    %v622 = vld [vmem:[%s4 + $0x18] sm:$0xf]
    %v623 = vld [vmem:[%s4 + $0x40] sm:$0xf]
    %v624 = vld [vmem:[%s4 + $0x68] sm:$0xf]
    %v625 = vld [vmem:[%s4 + $0x90] sm:$0xf]
    %v626 = vld [vmem:[%s4 + $0xb8] sm:$0xf]
    %v627 = vld [vmem:[%s4 + $0xe0] sm:$0xf]
    %v628 = vld [vmem:[%s4 + $0x108] sm:$0xf]
    %v629 = vld [vmem:[%s4 + $0x130] sm:$0xf]
    %v631 = vrot.slane %v621, 3
    %632 = vrot.lane.b32.xlu0 %v631, 64
    %v633 = vpop.permute.xlu0 %632
    %v642 = vunpack.c.l.b16 %v622
    %v643 = vunpack.c.l.b16 %v623
    %v644 = vunpack.c.l.b16 %v624
    %v645 = vunpack.c.l.b16 %v625
    %v646 = vunpack.c.l.b16 %v626
    %v647 = vunpack.c.l.b16 %v627
    %v648 = vunpack.c.l.b16 %v628
    %v649 = vunpack.c.l.b16 %v629
    %v650 = vpack.c.b16 %v643, %v642
    %v651 = vpack.c.b16 %v645, %v644
    %v652 = vpack.c.b16 %v647, %v646
    %v653 = vpack.c.b16 %v649, %v648
    %v659 = vsel %vm86, %v633, 0
    %661 = vmatprep.subr.bf16.mxu0 0
    %662 = vmatpush1.bf16.msra.mxu0 %v650
    %663 = vmatprep.subr.bf16.mxu0 0
    %664 = vmatpush1.bf16.msra.mxu0 %v651
    %665 = vmatprep.subr.bf16.mxu0 0
    %666 = vmatpush1.bf16.msra.mxu0 %v652
    %667 = vmatprep.subr.bf16.mxu0 0
    %668 = vmatpush1.bf16.msra.mxu0 %v653
    %669 = vmatprep.subr.bf16.mxu0 0
    %670 = vmatpush1.bf16.msra.mxu0 0
    %671 = vmatprep.subr.bf16.mxu0 0
    %672 = vmatpush1.bf16.msra.mxu0 0
    %673 = vmatprep.subr.bf16.mxu0 0
    %674 = vmatpush1.bf16.msra.mxu0 0
    %675 = vmatprep.subr.bf16.mxu0 0
    %676 = vmatpush1.bf16.msra.mxu0 0
    %677 = vmatprep.subr.bf16.mxu0 0
    %678 = vmatpush1.bf16.msra.mxu0 0
    %679 = vmatprep.subr.bf16.mxu0 0
    %680 = vmatpush1.bf16.msra.mxu0 0
    %681 = vmatprep.subr.bf16.mxu0 0
    %682 = vmatpush1.bf16.msra.mxu0 0
    %683 = vmatprep.subr.bf16.mxu0 0
    %684 = vmatpush1.bf16.msra.mxu0 0
    %685 = vmatprep.subr.bf16.mxu0 0
    %686 = vmatpush1.bf16.msra.mxu0 0
    %687 = vmatprep.subr.bf16.mxu0 0
    %688 = vmatpush1.bf16.msra.mxu0 0
    %689 = vmatprep.subr.bf16.mxu0 0
    %690 = vmatpush1.bf16.msra.mxu0 0
    %691 = vmatprep.subr.bf16.mxu0 0
    %692 = vmatpush1.bf16.msra.mxu0 0
    %693 = vmatprep.mubr.bf16.mxu0 0
    %694 = vmatmul.mubr.bf16.gmra.mrb[0].mxu0 %v659
    %v695 = vpop.f32.mrb[0].mxu0
    %v696 = vadd.f32 0.0, %v695
    %v697 = vpop.f32.mrb[0].mxu0
    %v698 = vpop.f32.mrb[0].mxu0
    %v699 = vpop.f32.mrb[0].mxu0
    %700 = vdwg.mxu0
    %v701 = vmul.f32 %v613, %v696
    %v702 = vmul.f32 %v614, %v696
    %v703 = vmul.f32 %v615, %v696
    %v704 = vmul.f32 %v616, %v696
    %v705 = vmul.f32 %v617, %v696
    %v706 = vmul.f32 %v618, %v696
    %v707 = vmul.f32 %v619, %v696
    %v708 = vmul.f32 %v620, %v696
    %vm709 = vcmask 517120
    %v710 = vsel %vm709, %v701, 0.0
    %711 = vadd.xlane.f32.xlu0 %v710
    %v712 = vpop.xlane.xlu0 %711
    %v713 = vsel %vm709, %v702, 0.0
    %714 = vadd.xlane.f32.xlu0 %v713
    %v715 = vpop.xlane.xlu0 %714
    %v716 = vsel %vm709, %v703, 0.0
    %717 = vadd.xlane.f32.xlu0 %v716
    %v718 = vpop.xlane.xlu0 %717
    %v719 = vsel %vm709, %v704, 0.0
    %720 = vadd.xlane.f32.xlu0 %v719
    %v721 = vpop.xlane.xlu0 %720
    %v722 = vsel %vm709, %v705, 0.0
    %723 = vadd.xlane.f32.xlu0 %v722
    %v724 = vpop.xlane.xlu0 %723
    %v725 = vsel %vm709, %v706, 0.0
    %726 = vadd.xlane.f32.xlu0 %v725
    %v727 = vpop.xlane.xlu0 %726
    %v728 = vsel %vm709, %v707, 0.0
    %729 = vadd.xlane.f32.xlu0 %v728
    %v730 = vpop.xlane.xlu0 %729
    %v731 = vsel %vm709, %v708, 0.0
    %732 = vadd.xlane.f32.xlu0 %v731
    %v733 = vpop.xlane.xlu0 %732
    %vm734 = vcmask 1041408
    %v735 = vsel %vm734, %v712, -inf
    %v736 = vsel %vm734, %v715, -inf
    %v737 = vsel %vm734, %v718, -inf
    %v738 = vsel %vm734, %v721, -inf
    %v739 = vsel %vm734, %v724, -inf
    %v740 = vmax.f32 %v735, %v739
    %v741 = vsel %vm734, %v727, -inf
    %v742 = vmax.f32 %v736, %v741
    %v743 = vsel %vm734, %v730, -inf
    %v744 = vmax.f32 %v737, %v743
    %v745 = vsel %vm734, %v733, -inf
    %v746 = vmax.f32 %v738, %v745
    %v747 = vmax.f32 %v740, %v742
    %v748 = vmax.f32 %v744, %v746
    %v749 = vmax.f32 %v747, %v748
    %v750 = vsub.f32 %v712, %v749
    %v751 = vsub.f32 %v715, %v749
    %v752 = vsub.f32 %v718, %v749
    %v753 = vsub.f32 %v721, %v749
    %v754 = vsub.f32 %v724, %v749
    %v755 = vsub.f32 %v727, %v749
    %v756 = vsub.f32 %v730, %v749
    %v757 = vsub.f32 %v733, %v749
    %v758 = vmul.f32 %v750, 1.442695
    %v759 = vpow.pop %v758
    %v760 = vmul.f32 %v751, 1.442695
    %v761 = vpow.pop %v760
    %v762 = vmul.f32 %v752, 1.442695
    %v763 = vpow.pop %v762
    %v764 = vmul.f32 %v753, 1.442695
    %v765 = vpow.pop %v764
    %v766 = vmul.f32 %v754, 1.442695
    %v767 = vpow.pop %v766
    %v768 = vmul.f32 %v755, 1.442695
    %v769 = vpow.pop %v768
    %v770 = vmul.f32 %v756, 1.442695
    %v771 = vpow.pop %v770
    %v772 = vmul.f32 %v757, 1.442695
    %v773 = vpow.pop %v772
    %v774 = vsel %vm734, %v759, 0.0
    %v775 = vsel %vm734, %v761, 0.0
    %v776 = vadd.f32 %v774, %v775
    %v777 = vsel %vm734, %v763, 0.0
    %v778 = vadd.f32 %v776, %v777
    %v779 = vsel %vm734, %v765, 0.0
    %v780 = vadd.f32 %v778, %v779
    %v781 = vsel %vm734, %v767, 0.0
    %v782 = vadd.f32 %v780, %v781
    %v783 = vsel %vm734, %v769, 0.0
    %v784 = vadd.f32 %v782, %v783
    %v785 = vsel %vm734, %v771, 0.0
    %v786 = vadd.f32 %v784, %v785
    %v787 = vsel %vm734, %v773, 0.0
    %v788 = vadd.f32 %v786, %v787
    %v789 = vrcp.pop %v788
    %v790 = vmul.f32 %v759, %v789
    %v791 = vmul.f32 %v761, %v789
    %v792 = vmul.f32 %v763, %v789
    %v793 = vmul.f32 %v765, %v789
    %v794 = vmul.f32 %v767, %v789
    %v795 = vmul.f32 %v769, %v789
    %v796 = vmul.f32 %v771, %v789
    %v797 = vmul.f32 %v773, %v789
    %v798 = vmul.f32 %v790, %v613
    %v799 = vmul.f32 %v791, %v614
    %v800 = vmul.f32 %v792, %v615
    %v801 = vmul.f32 %v793, %v616
    %v802 = vmul.f32 %v794, %v617
    %v803 = vmul.f32 %v795, %v618
    %v804 = vmul.f32 %v796, %v619
    %v805 = vmul.f32 %v797, %v620
    %v806 = vsel %vm709, %v798, 0.0
    %v807 = vsel %vm709, %v799, 0.0
    %v808 = vadd.f32 %v806, %v807
    %v809 = vsel %vm709, %v800, 0.0
    %v810 = vadd.f32 %v808, %v809
    %v811 = vsel %vm709, %v801, 0.0
    %v812 = vadd.f32 %v810, %v811
    %v813 = vsel %vm709, %v802, 0.0
    %v814 = vadd.f32 %v812, %v813
    %v815 = vsel %vm709, %v803, 0.0
    %v816 = vadd.f32 %v814, %v815
    %v817 = vsel %vm709, %v804, 0.0
    %v818 = vadd.f32 %v816, %v817
    %v819 = vsel %vm709, %v805, 0.0
    %v820 = vadd.f32 %v818, %v819
    %v821 = vpack.c.bf16 %v820, %v820
    %v822 = vld [vmem:[%s4 + $0x1c] sm:$0xf]
    %v823 = vld [vmem:[%s4 + $0x44] sm:$0xf]
    %v824 = vld [vmem:[%s4 + $0x6c] sm:$0xf]
    %v825 = vld [vmem:[%s4 + $0x94] sm:$0xf]
    %v826 = vld [vmem:[%s4 + $0xbc] sm:$0xf]
    %v827 = vld [vmem:[%s4 + $0xe4] sm:$0xf]
    %v828 = vld [vmem:[%s4 + $0x10c] sm:$0xf]
    %v829 = vld [vmem:[%s4 + $0x134] sm:$0xf]
    %v830 = vld [vmem:[%s4 + $0x20] sm:$0xf]
    %v831 = vld [vmem:[%s4 + $0x48] sm:$0xf]
    %v832 = vld [vmem:[%s4 + $0x70] sm:$0xf]
    %v833 = vld [vmem:[%s4 + $0x98] sm:$0xf]
    %v834 = vld [vmem:[%s4 + $0xc0] sm:$0xf]
    %v835 = vld [vmem:[%s4 + $0xe8] sm:$0xf]
    %v836 = vld [vmem:[%s4 + $0x110] sm:$0xf]
    %v837 = vld [vmem:[%s4 + $0x138] sm:$0xf]
    %v846 = vunpack.c.l.b16 %v830
    %v847 = vunpack.c.l.b16 %v831
    %v848 = vunpack.c.l.b16 %v832
    %v849 = vunpack.c.l.b16 %v833
    %v850 = vunpack.c.l.b16 %v834
    %v851 = vunpack.c.l.b16 %v835
    %v852 = vunpack.c.l.b16 %v836
    %v853 = vunpack.c.l.b16 %v837
    %v854 = vpack.c.b16 %v847, %v846
    %v855 = vpack.c.b16 %v849, %v848
    %v856 = vpack.c.b16 %v851, %v850
    %v857 = vpack.c.b16 %v853, %v852
    %862 = vmatprep.subr.bf16.mxu0 0
    %863 = vmatpush1.bf16.msra.mxu0 %v854
    %864 = vmatprep.subr.bf16.mxu0 0
    %865 = vmatpush1.bf16.msra.mxu0 %v855
    %866 = vmatprep.subr.bf16.mxu0 0
    %867 = vmatpush1.bf16.msra.mxu0 %v856
    %868 = vmatprep.subr.bf16.mxu0 0
    %869 = vmatpush1.bf16.msra.mxu0 %v857
    %870 = vmatprep.subr.bf16.mxu0 0
    %871 = vmatpush1.bf16.msra.mxu0 0
    %872 = vmatprep.subr.bf16.mxu0 0
    %873 = vmatpush1.bf16.msra.mxu0 0
    %874 = vmatprep.subr.bf16.mxu0 0
    %875 = vmatpush1.bf16.msra.mxu0 0
    %876 = vmatprep.subr.bf16.mxu0 0
    %877 = vmatpush1.bf16.msra.mxu0 0
    %878 = vmatprep.subr.bf16.mxu0 0
    %879 = vmatpush1.bf16.msra.mxu0 0
    %880 = vmatprep.subr.bf16.mxu0 0
    %881 = vmatpush1.bf16.msra.mxu0 0
    %882 = vmatprep.subr.bf16.mxu0 0
    %883 = vmatpush1.bf16.msra.mxu0 0
    %884 = vmatprep.subr.bf16.mxu0 0
    %885 = vmatpush1.bf16.msra.mxu0 0
    %886 = vmatprep.subr.bf16.mxu0 0
    %887 = vmatpush1.bf16.msra.mxu0 0
    %888 = vmatprep.subr.bf16.mxu0 0
    %889 = vmatpush1.bf16.msra.mxu0 0
    %890 = vmatprep.subr.bf16.mxu0 0
    %891 = vmatpush1.bf16.msra.mxu0 0
    %892 = vmatprep.subr.bf16.mxu0 0
    %893 = vmatpush1.bf16.msra.mxu0 0
    %894 = vmatprep.mubr.bf16.mxu0 0
    %895 = vmatmul.mubr.bf16.gmra.mrb[0].mxu0 %v659
    %v896 = vpop.f32.mrb[0].mxu0
    %v897 = vadd.f32 0.0, %v896
    %v898 = vpop.f32.mrb[0].mxu0
    %v899 = vpop.f32.mrb[0].mxu0
    %v900 = vpop.f32.mrb[0].mxu0
    %901 = vdwg.mxu0
    %v910 = vunpack.c.l.b16 %v822
    %v911 = vunpack.c.l.b16 %v823
    %v912 = vunpack.c.l.b16 %v824
    %v913 = vunpack.c.l.b16 %v825
    %v914 = vunpack.c.l.b16 %v826
    %v915 = vunpack.c.l.b16 %v827
    %v916 = vunpack.c.l.b16 %v828
    %v917 = vunpack.c.l.b16 %v829
    %v918 = vpack.c.b16 %v911, %v910
    %v919 = vpack.c.b16 %v913, %v912
    %v920 = vpack.c.b16 %v915, %v914
    %v921 = vpack.c.b16 %v917, %v916
    %v927 = vsel %vm86, %v821, 0
    %929 = vmatprep.subr.bf16.mxu0 0
    %930 = vmatpush1.bf16.msra.mxu0 %v918
    %931 = vmatprep.subr.bf16.mxu0 0
    %932 = vmatpush1.bf16.msra.mxu0 %v919
    %933 = vmatprep.subr.bf16.mxu0 0
    %934 = vmatpush1.bf16.msra.mxu0 %v920
    %935 = vmatprep.subr.bf16.mxu0 0
    %936 = vmatpush1.bf16.msra.mxu0 %v921
    %937 = vmatprep.subr.bf16.mxu0 0
    %938 = vmatpush1.bf16.msra.mxu0 0
    %939 = vmatprep.subr.bf16.mxu0 0
    %940 = vmatpush1.bf16.msra.mxu0 0
    %941 = vmatprep.subr.bf16.mxu0 0
    %942 = vmatpush1.bf16.msra.mxu0 0
    %943 = vmatprep.subr.bf16.mxu0 0
    %944 = vmatpush1.bf16.msra.mxu0 0
    %945 = vmatprep.subr.bf16.mxu0 0
    %946 = vmatpush1.bf16.msra.mxu0 0
    %947 = vmatprep.subr.bf16.mxu0 0
    %948 = vmatpush1.bf16.msra.mxu0 0
    %949 = vmatprep.subr.bf16.mxu0 0
    %950 = vmatpush1.bf16.msra.mxu0 0
    %951 = vmatprep.subr.bf16.mxu0 0
    %952 = vmatpush1.bf16.msra.mxu0 0
    %953 = vmatprep.subr.bf16.mxu0 0
    %954 = vmatpush1.bf16.msra.mxu0 0
    %955 = vmatprep.subr.bf16.mxu0 0
    %956 = vmatpush1.bf16.msra.mxu0 0
    %957 = vmatprep.subr.bf16.mxu0 0
    %958 = vmatpush1.bf16.msra.mxu0 0
    %959 = vmatprep.subr.bf16.mxu0 0
    %960 = vmatpush1.bf16.msra.mxu0 0
    %961 = vmatprep.mubr.bf16.mxu0 0
    %962 = vmatmul.mubr.bf16.gmra.mrb[0].mxu0 %v927
    %v963 = vpop.f32.mrb[0].mxu0
    %v964 = vadd.f32 %v897, %v963
    %v965 = vpop.f32.mrb[0].mxu0
    %v966 = vpop.f32.mrb[0].mxu0
    %v967 = vpop.f32.mrb[0].mxu0
    %968 = vdwg.mxu0
    %v969 = vld [vmem:[%s5] sm:$0x1]
    %v971 = vlaneseq
    %v972 = vshrl.u32 %v971, 7
    %v973 = vsub.s32 0, %v972
    %v974 = vrot.slane %v969, %v973
    %v976 = vadd.f32 %v964, %v974
    %v977 = vtanh.pop %v976
    %v978 = vpack.c.bf16 %v977, %v977
    %v979 = vld [vmem:[%s4 + $0x24] sm:$0xf]
    %v980 = vld [vmem:[%s4 + $0x4c] sm:$0xf]
    %v981 = vld [vmem:[%s4 + $0x74] sm:$0xf]
    %v982 = vld [vmem:[%s4 + $0x9c] sm:$0xf]
    %v983 = vld [vmem:[%s5 + $0x1] sm:$0x1]
    %v985 = vlaneseq
    %v986 = vshrl.u32 %v985, 7
    %v987 = vsub.s32 0, %v986
    %v988 = vrot.slane %v983, %v987
    %v994 = vunpack.c.l.b16 %v979
    %v995 = vunpack.c.l.b16 %v980
    %v996 = vunpack.c.l.b16 %v981
    %v997 = vunpack.c.l.b16 %v982
    %v998 = vpack.c.b16 %v995, %v994
    %v999 = vpack.c.b16 %v997, %v996
    %vm1002 = vcmask 261120
    %v1004 = vsel %vm1002, %v978, 0
    %1006 = vmatprep.subr.bf16.mxu0 0
    %1007 = vmatpush1.bf16.msra.mxu0 %v998
    %1008 = vmatprep.subr.bf16.mxu0 0
    %1009 = vmatpush1.bf16.msra.mxu0 %v999
    %1010 = vmatprep.subr.bf16.mxu0 0
    %1011 = vmatpush1.bf16.msra.mxu0 0
    %1012 = vmatprep.subr.bf16.mxu0 0
    %1013 = vmatpush1.bf16.msra.mxu0 0
    %1014 = vmatprep.subr.bf16.mxu0 0
    %1015 = vmatpush1.bf16.msra.mxu0 0
    %1016 = vmatprep.subr.bf16.mxu0 0
    %1017 = vmatpush1.bf16.msra.mxu0 0
    %1018 = vmatprep.subr.bf16.mxu0 0
    %1019 = vmatpush1.bf16.msra.mxu0 0
    %1020 = vmatprep.subr.bf16.mxu0 0
    %1021 = vmatpush1.bf16.msra.mxu0 0
    %1022 = vmatprep.subr.bf16.mxu0 0
    %1023 = vmatpush1.bf16.msra.mxu0 0
    %1024 = vmatprep.subr.bf16.mxu0 0
    %1025 = vmatpush1.bf16.msra.mxu0 0
    %1026 = vmatprep.subr.bf16.mxu0 0
    %1027 = vmatpush1.bf16.msra.mxu0 0
    %1028 = vmatprep.subr.bf16.mxu0 0
    %1029 = vmatpush1.bf16.msra.mxu0 0
    %1030 = vmatprep.subr.bf16.mxu0 0
    %1031 = vmatpush1.bf16.msra.mxu0 0
    %1032 = vmatprep.subr.bf16.mxu0 0
    %1033 = vmatpush1.bf16.msra.mxu0 0
    %1034 = vmatprep.subr.bf16.mxu0 0
    %1035 = vmatpush1.bf16.msra.mxu0 0
    %1036 = vmatprep.subr.bf16.mxu0 0
    %1037 = vmatpush1.bf16.msra.mxu0 0
    %1038 = vmatprep.mubr.bf16.mxu0 0
    %1039 = vmatmul.mubr.bf16.gmra.mrb[0].mxu0 %v1004
    %v1040 = vpop.f32.mrb[0].mxu0
    %v1041 = vadd.f32 %v988, %v1040
    %v1042 = vpop.f32.mrb[0].mxu0
    %v1043 = vpop.f32.mrb[0].mxu0
    %v1044 = vpop.f32.mrb[0].mxu0
    %1045 = vdwg.mxu0
    %v1046 = vsel %vm734, %v1041, -inf
    %1047 = vmax.xlane.f32.xlu0 %v1046
    %v1048 = vpop.xlane.xlu0 %1047
    %v1049 = vsub.f32 %v1041, %v1048
    %v1050 = vmul.f32 %v1049, 1.442695
    %v1051 = vpow.pop %v1050
    %v1052 = vsel %vm734, %v1051, 0.0
    %1053 = vadd.xlane.f32.xlu0 %v1052
    %v1054 = vpop.xlane.xlu0 %1053
    %v1055 = vlog2.pop %v1054
    %v1056 = vmul.f32 %v1055, 0.6931472
    %v1057 = vadd.f32 %v1056, %v1048
    %v1058 = vsub.f32 %v1041, %v1057
    %1059 = vst [vmem:[#allocation2] sm:$0x3] %v1058
    // Predicated region
    $region26: #{decoder_forward.1} parent=1 // pred_check
      _
    $region27: #{decoder_forward.1} parent=1 // pred_check_branch
      %1061 = sbr.rel (0) target = $region29
    $region28: #{decoder_forward.1} parent=1 // pred_region
      %s1063 = ssub.s32 32, 32
      %1064 = vsyncadd [#allocation3], %s1063
      %s1066 = sshll.u32 [#allocation2], 4
      %s1067 = int_to_ptr.vmem [resolvable:$true] %s1066
      %1069 = dma.vmem_to_hbm [thread:$0]  %s1067, 32, %s6, [#allocation3]
    $region29: #{decoder_forward.1} parent=1 // pred_fallthru
      _
    // Predicated region
    $region30: #{decoder_forward.1} parent=1 // pred_check
      _
    $region31: #{decoder_forward.1} parent=1 // pred_check_branch
      %1071 = sbr.rel (0) target = $region33
    $region32: #{decoder_forward.1} parent=1 // pred_region
      _
    $region33: #{decoder_forward.1} parent=1 // pred_fallthru
      _
    // Predicated region
    $region34: #{decoder_forward.1} parent=1 // pred_check
      _
    $region35: #{decoder_forward.1} parent=1 // pred_check_branch
      %1073 = sbr.rel (0) target = $region37
    $region36: #{decoder_forward.1} parent=1 // pred_region
      _
    $region37: #{decoder_forward.1} parent=1 // pred_fallthru
      _
    // Predicated region
    $region38: #{decoder_forward.1} parent=1 // pred_check
      _
    $region39: #{decoder_forward.1} parent=1 // pred_check_branch
      %1075 = sbr.rel (0) target = $region41
    $region40: #{decoder_forward.1} parent=1 // pred_region
      %1076 = dma.done [#allocation3], 32
    $region41: #{decoder_forward.1} parent=1 // pred_fallthru
      _
    // Predicated region
    $region42: #{decoder_forward.1} parent=1 // pred_check
      _
    $region43: #{decoder_forward.1} parent=1 // pred_check_branch
      %1078 = sbr.rel (0) target = $region45
    $region44: #{decoder_forward.1} parent=1 // pred_region
      _
    $region45: #{decoder_forward.1} parent=1 // pred_fallthru
      _
    // Predicated region
    $region46: #{decoder_forward.1} parent=1 // pred_check
      _
    $region47: #{decoder_forward.1} parent=1 // pred_check_branch
      %1080 = sbr.rel (0) target = $region49
    $region48: #{decoder_forward.1} parent=1 // pred_region
      _
    $region49: #{decoder_forward.1} parent=1 // pred_fallthru
      _
    %1081 = vsyncpa [#allocation3], 1

</llo_original>
